<compile_context>
chip_gen: v7x
topology: tpu7x:2x2x1
jax: 0.10.0
libtpu: 0.0.40
codegen_flags: <defaults>
</compile_context>

<pallas_src>
import functools

import jax
import jax.numpy as jnp
from jax.experimental import pallas as pl
from jax.experimental.pallas import tpu as pltpu

# Logical (PyTorch) dims.
N_INPUT, N_H1, N_H2, N_H3, N_OUT = 256, 500, 250, 120, 16
# Lane-padded dims used inside the kernel (multiples of 128).
P_IN, P_H1, P_H2, P_H3, P_OUT = 256, 512, 256, 128, 128


def _round_up(n, m):
    return ((n + m - 1) // m) * m


def encoder_kernel(x_ref,
                   w1_ref, b1_ref,
                   w2_ref, b2_ref,
                   w3_ref, b3_ref,
                   w4_ref, b4_ref,
                   o_ref):
    """All four layers fused. x tile [blk, 256] bf16, weights bf16, biases f32."""
    x = x_ref[...]

    h = jnp.dot(x, w1_ref[...], preferred_element_type=jnp.float32) + b1_ref[...]
    h = jnp.maximum(h, 0.0).astype(jnp.bfloat16)      # ReLU in f32, bf16 for next MXU op

    h = jnp.dot(h, w2_ref[...], preferred_element_type=jnp.float32) + b2_ref[...]
    h = jnp.maximum(h, 0.0).astype(jnp.bfloat16)

    h = jnp.dot(h, w3_ref[...], preferred_element_type=jnp.float32) + b3_ref[...]
    h = jnp.maximum(h, 0.0).astype(jnp.bfloat16)

    h = jnp.dot(h, w4_ref[...], preferred_element_type=jnp.float32) + b4_ref[...]
    # Sigmoid: exp on the EUP, reciprocal also on the EUP (approx) -> no VPU divide.
    o_ref[...] = pl.reciprocal(1.0 + jnp.exp(-h), approx=True)


def prepare_params(params):
    """Zero-pad weights/biases once to lane-aligned dims; weights -> bf16, biases f32.

    Padded rows/columns are zero, so ReLU(0)=0 propagates zeros through the padded
    lanes and the math is unchanged; padded output lanes are sliced away outside.
    """
    pad_dims = [(P_IN, P_H1), (P_H1, P_H2), (P_H2, P_H3), (P_H3, P_OUT)]
    out = {}
    for idx, (pi, po) in enumerate(pad_dims, start=1):
        w = params[f"w{idx}"]
        b = params[f"b{idx}"]
        wp = jnp.zeros((pi, po), jnp.bfloat16)
        wp = wp.at[: w.shape[0], : w.shape[1]].set(w.astype(jnp.bfloat16))
        bp = jnp.zeros((1, po), jnp.float32)
        bp = bp.at[:, : b.shape[1]].set(b.astype(jnp.float32))
        out[f"w{idx}"] = wp
        out[f"b{idx}"] = bp
    return out


@functools.partial(jax.jit, static_argnames=("block_b",))
def encoder_forward(x, padded_params, block_b=256):
    """x: [B, 256] float32. padded_params: output of prepare_params()."""
    B = x.shape[0]
    # Batch tile: as large as requested, but never larger than the (8-aligned) batch.
    blk = min(_round_up(block_b, 8), _round_up(B, 8))
    Bp = _round_up(B, blk)

    x = x.astype(jnp.bfloat16)
    if Bp != B:
        x = jnp.pad(x, ((0, Bp - B), (0, 0)))

    p = padded_params
    w1, b1 = p["w1"], p["b1"]
    w2, b2 = p["w2"], p["b2"]
    w3, b3 = p["w3"], p["b3"]
    w4, b4 = p["w4"], p["b4"]

    # Grid-invariant operands: full block, constant index_map, single-buffered
    # (no second pipeline buffer needed since the block never changes).
    def const_spec(shape):
        return pl.BlockSpec(shape, lambda i: (0, 0), pipeline_mode=pl.Buffered(1))

    out = pl.pallas_call(
        encoder_kernel,
        out_shape=jax.ShapeDtypeStruct((Bp, P_OUT), jnp.float32),
        grid_spec=pltpu.PrefetchScalarGridSpec(
            num_scalar_prefetch=0,
            grid=(Bp // blk,),
            in_specs=[
                pl.BlockSpec((blk, P_IN), lambda i: (i, 0)),   # x tile over batch
                const_spec(w1.shape), const_spec(b1.shape),
                const_spec(w2.shape), const_spec(b2.shape),
                const_spec(w3.shape), const_spec(b3.shape),
                const_spec(w4.shape), const_spec(b4.shape),
            ],
            out_specs=pl.BlockSpec((blk, P_OUT), lambda i: (i, 0)),  # lane-dense store
        ),
        compiler_params=pltpu.CompilerParams(
            # Batch axis is embarrassingly parallel; with grid length >= 2 this
            # also shards across the two TensorCores on v7x.
            dimension_semantics=("parallel",),
            # Default scoped VMEM is ample for blk <= ~1024; set vmem_limit_bytes
            # explicitly if sweeping larger tiles on v7x (64 MiB physical VMEM).
        ),
    )(x, w1, b1, w2, b2, w3, b3, w4, b4)

    return out[:B, :N_OUT]


def init_params(key):
    """Deterministic init mimicking nn.Linear's U(-1/sqrt(fan_in), 1/sqrt(fan_in))."""
    dims = [(N_INPUT, N_H1), (N_H1, N_H2), (N_H2, N_H3), (N_H3, N_OUT)]
    params = {}
    for idx, (fan_in, fan_out) in enumerate(dims, start=1):
        key, kw, kb = jax.random.split(key, 3)
        bound = 1.0 / jnp.sqrt(jnp.float32(fan_in))
        params[f"w{idx}"] = jax.random.uniform(
            kw, (fan_in, fan_out), jnp.float32, -bound, bound)
        params[f"b{idx}"] = jax.random.uniform(
            kb, (1, fan_out), jnp.float32, -bound, bound)
    return params


def reference_forward(x, params):
    h = jnp.maximum(x @ params["w1"] + params["b1"], 0.0)
    h = jnp.maximum(h @ params["w2"] + params["b2"], 0.0)
    h = jnp.maximum(h @ params["w3"] + params["b3"], 0.0)
    return jax.nn.sigmoid(h @ params["w4"] + params["b4"])


if __name__ == "__main__":
    key = jax.random.PRNGKey(0)
    key, kx = jax.random.split(key)

    batch = 8
    x = jax.random.normal(kx, (batch, N_INPUT), jnp.float32)
    params = init_params(key)
    padded_params = prepare_params(params)

    out = encoder_forward(x, padded_params)
    out = jax.block_until_ready(out)

    ref = reference_forward(x, params)
    assert out.shape == (batch, N_OUT)
    # bf16 matmul inputs (f32 accumulate) -> small drift vs. the f32 reference.
    assert jnp.allclose(out, ref, atol=2e-2, rtol=2e-2), "mismatch vs reference"

    print("KERNEL_OK")
</pallas_src>

<mosaic_0001>
module attributes {stable_mosaic.version = 11 : i64} {
  func.func @encoder_kernel(%arg0: i32, %arg1: memref<8x256xbf16, #tpu.memory_space<vmem>>, %arg2: memref<256x512xbf16, #tpu.memory_space<vmem>>, %arg3: memref<1x512xf32, #tpu.memory_space<vmem>>, %arg4: memref<512x256xbf16, #tpu.memory_space<vmem>>, %arg5: memref<1x256xf32, #tpu.memory_space<vmem>>, %arg6: memref<256x128xbf16, #tpu.memory_space<vmem>>, %arg7: memref<1x128xf32, #tpu.memory_space<vmem>>, %arg8: memref<128x128xbf16, #tpu.memory_space<vmem>>, %arg9: memref<1x128xf32, #tpu.memory_space<vmem>>, %arg10: memref<8x128xf32, #tpu.memory_space<vmem>>) attributes {dimension_semantics = [#tpu.dimension_semantics<parallel>], iteration_bounds = array<i64: 1>, scalar_prefetch = 0 : i64, scratch_operands = 0 : i64, tpu.core_type = #tpu.core_type<tc>, window_params = [{transform_indices = @transform_0, window_bounds = array<i64: 8, 256>}, {pipeline_mode = #tpu.pipeline_mode<synchronous>, transform_indices = @transform_1, window_bounds = array<i64: 256, 512>}, {pipeline_mode = #tpu.pipeline_mode<synchronous>, transform_indices = @transform_2, window_bounds = array<i64: 1, 512>}, {pipeline_mode = #tpu.pipeline_mode<synchronous>, transform_indices = @transform_3, window_bounds = array<i64: 512, 256>}, {pipeline_mode = #tpu.pipeline_mode<synchronous>, transform_indices = @transform_4, window_bounds = array<i64: 1, 256>}, {pipeline_mode = #tpu.pipeline_mode<synchronous>, transform_indices = @transform_5, window_bounds = array<i64: 256, 128>}, {pipeline_mode = #tpu.pipeline_mode<synchronous>, transform_indices = @transform_6, window_bounds = array<i64: 1, 128>}, {pipeline_mode = #tpu.pipeline_mode<synchronous>, transform_indices = @transform_7, window_bounds = array<i64: 128, 128>}, {pipeline_mode = #tpu.pipeline_mode<synchronous>, transform_indices = @transform_8, window_bounds = array<i64: 1, 128>}, {transform_indices = @transform_9, window_bounds = array<i64: 8, 128>}]} {
    %c0 = arith.constant 0 : index
    %c0_0 = arith.constant 0 : index
    %0 = vector.load %arg1[%c0, %c0_0] : memref<8x256xbf16, #tpu.memory_space<vmem>>, vector<8x256xbf16>
    %c0_1 = arith.constant 0 : index
    %c0_2 = arith.constant 0 : index
    %1 = vector.load %arg2[%c0_1, %c0_2] : memref<256x512xbf16, #tpu.memory_space<vmem>>, vector<256x512xbf16>
    %cst = arith.constant dense<0.000000e+00> : vector<8x512xf32>
    %2 = tpu.matmul %0, %1, %cst {dimension_numbers = #tpu.dot_dimension_numbers<[1], [0], [0], [1], [0, 0, 1, 1], [], []>} : vector<8x256xbf16>, vector<256x512xbf16>, vector<8x512xf32> -> vector<8x512xf32>
    %c0_3 = arith.constant 0 : index
    %c0_4 = arith.constant 0 : index
    %3 = vector.load %arg3[%c0_3, %c0_4] : memref<1x512xf32, #tpu.memory_space<vmem>>, vector<1x512xf32>
    %4 = vector.broadcast %3 : vector<1x512xf32> to vector<8x512xf32>
    %5 = arith.addf %2, %4 : vector<8x512xf32>
    %cst_5 = arith.constant 0.000000e+00 : f32
    %6 = vector.broadcast %cst_5 : f32 to vector<8x512xf32>
    %7 = arith.maximumf %5, %6 : vector<8x512xf32>
    %8 = arith.truncf %7 : vector<8x512xf32> to vector<8x512xbf16>
    %c0_6 = arith.constant 0 : index
    %c0_7 = arith.constant 0 : index
    %9 = vector.load %arg4[%c0_6, %c0_7] : memref<512x256xbf16, #tpu.memory_space<vmem>>, vector<512x256xbf16>
    %cst_8 = arith.constant dense<0.000000e+00> : vector<8x256xf32>
    %10 = tpu.matmul %8, %9, %cst_8 {dimension_numbers = #tpu.dot_dimension_numbers<[1], [0], [0], [1], [0, 0, 1, 1], [], []>} : vector<8x512xbf16>, vector<512x256xbf16>, vector<8x256xf32> -> vector<8x256xf32>
    %c0_9 = arith.constant 0 : index
    %c0_10 = arith.constant 0 : index
    %11 = vector.load %arg5[%c0_9, %c0_10] : memref<1x256xf32, #tpu.memory_space<vmem>>, vector<1x256xf32>
    %12 = vector.broadcast %11 : vector<1x256xf32> to vector<8x256xf32>
    %13 = arith.addf %10, %12 : vector<8x256xf32>
    %cst_11 = arith.constant 0.000000e+00 : f32
    %14 = vector.broadcast %cst_11 : f32 to vector<8x256xf32>
    %15 = arith.maximumf %13, %14 : vector<8x256xf32>
    %16 = arith.truncf %15 : vector<8x256xf32> to vector<8x256xbf16>
    %c0_12 = arith.constant 0 : index
    %c0_13 = arith.constant 0 : index
    %17 = vector.load %arg6[%c0_12, %c0_13] : memref<256x128xbf16, #tpu.memory_space<vmem>>, vector<256x128xbf16>
    %cst_14 = arith.constant dense<0.000000e+00> : vector<8x128xf32>
    %18 = tpu.matmul %16, %17, %cst_14 {dimension_numbers = #tpu.dot_dimension_numbers<[1], [0], [0], [1], [0, 0, 1, 1], [], []>} : vector<8x256xbf16>, vector<256x128xbf16>, vector<8x128xf32> -> vector<8x128xf32>
    %c0_15 = arith.constant 0 : index
    %c0_16 = arith.constant 0 : index
    %19 = vector.load %arg7[%c0_15, %c0_16] : memref<1x128xf32, #tpu.memory_space<vmem>>, vector<1x128xf32>
    %20 = vector.broadcast %19 : vector<1x128xf32> to vector<8x128xf32>
    %21 = arith.addf %18, %20 : vector<8x128xf32>
    %cst_17 = arith.constant 0.000000e+00 : f32
    %22 = vector.broadcast %cst_17 : f32 to vector<8x128xf32>
    %23 = arith.maximumf %21, %22 : vector<8x128xf32>
    %24 = arith.truncf %23 : vector<8x128xf32> to vector<8x128xbf16>
    %c0_18 = arith.constant 0 : index
    %c0_19 = arith.constant 0 : index
    %25 = vector.load %arg8[%c0_18, %c0_19] : memref<128x128xbf16, #tpu.memory_space<vmem>>, vector<128x128xbf16>
    %cst_20 = arith.constant dense<0.000000e+00> : vector<8x128xf32>
    %26 = tpu.matmul %24, %25, %cst_20 {dimension_numbers = #tpu.dot_dimension_numbers<[1], [0], [0], [1], [0, 0, 1, 1], [], []>} : vector<8x128xbf16>, vector<128x128xbf16>, vector<8x128xf32> -> vector<8x128xf32>
    %c0_21 = arith.constant 0 : index
    %c0_22 = arith.constant 0 : index
    %27 = vector.load %arg9[%c0_21, %c0_22] : memref<1x128xf32, #tpu.memory_space<vmem>>, vector<1x128xf32>
    %28 = vector.broadcast %27 : vector<1x128xf32> to vector<8x128xf32>
    %29 = arith.addf %26, %28 : vector<8x128xf32>
    %cst_23 = arith.constant 0.000000e+00 : f32
    %30 = vector.broadcast %cst_23 : f32 to vector<8x128xf32>
    %31 = arith.subf %30, %29 : vector<8x128xf32>
    %32 = math.exp %31 : vector<8x128xf32>
    %cst_24 = arith.constant 1.000000e+00 : f32
    %33 = vector.broadcast %cst_24 : f32 to vector<8x128xf32>
    %34 = arith.addf %33, %32 : vector<8x128xf32>
    %35 = tpu.reciprocal %34 {approx = true} : vector<8x128xf32> -> vector<8x128xf32>
    %c0_25 = arith.constant 0 : index
    %c0_26 = arith.constant 0 : index
    %36 = vector.load %arg10[%c0_25, %c0_26] : memref<8x128xf32, #tpu.memory_space<vmem>>, vector<8x128xf32>
    tpu.vector_store %arg10[%c0_25, %c0_26], %35 {strides = array<i32>} : memref<8x128xf32, #tpu.memory_space<vmem>>, vector<8x128xf32>,
    return
  }
  func.func @transform_0(%arg0: i32) -> (i32, i32) {
    %c0_i32 = arith.constant 0 : i32
    %c0_i32_0 = arith.constant 0 : i32
    return %arg0, %c0_i32 : i32, i32
  }
  func.func @transform_1(%arg0: i32) -> (i32, i32) {
    %c0_i32 = arith.constant 0 : i32
    %c0_i32_0 = arith.constant 0 : i32
    %c0_i32_1 = arith.constant 0 : i32
    return %c0_i32, %c0_i32_0 : i32, i32
  }
  func.func @transform_2(%arg0: i32) -> (i32, i32) {
    %c0_i32 = arith.constant 0 : i32
    %c0_i32_0 = arith.constant 0 : i32
    %c0_i32_1 = arith.constant 0 : i32
    return %c0_i32, %c0_i32_0 : i32, i32
  }
  func.func @transform_3(%arg0: i32) -> (i32, i32) {
    %c0_i32 = arith.constant 0 : i32
    %c0_i32_0 = arith.constant 0 : i32
    %c0_i32_1 = arith.constant 0 : i32
    return %c0_i32, %c0_i32_0 : i32, i32
  }
  func.func @transform_4(%arg0: i32) -> (i32, i32) {
    %c0_i32 = arith.constant 0 : i32
    %c0_i32_0 = arith.constant 0 : i32
    %c0_i32_1 = arith.constant 0 : i32
    return %c0_i32, %c0_i32_0 : i32, i32
  }
  func.func @transform_5(%arg0: i32) -> (i32, i32) {
    %c0_i32 = arith.constant 0 : i32
    %c0_i32_0 = arith.constant 0 : i32
    %c0_i32_1 = arith.constant 0 : i32
    return %c0_i32, %c0_i32_0 : i32, i32
  }
  func.func @transform_6(%arg0: i32) -> (i32, i32) {
    %c0_i32 = arith.constant 0 : i32
    %c0_i32_0 = arith.constant 0 : i32
    %c0_i32_1 = arith.constant 0 : i32
    return %c0_i32, %c0_i32_0 : i32, i32
  }
  func.func @transform_7(%arg0: i32) -> (i32, i32) {
    %c0_i32 = arith.constant 0 : i32
    %c0_i32_0 = arith.constant 0 : i32
    %c0_i32_1 = arith.constant 0 : i32
    return %c0_i32, %c0_i32_0 : i32, i32
  }
  func.func @transform_8(%arg0: i32) -> (i32, i32) {
    %c0_i32 = arith.constant 0 : i32
    %c0_i32_0 = arith.constant 0 : i32
    %c0_i32_1 = arith.constant 0 : i32
    return %c0_i32, %c0_i32_0 : i32, i32
  }
  func.func @transform_9(%arg0: i32) -> (i32, i32) {
    %c0_i32 = arith.constant 0 : i32
    %c0_i32_0 = arith.constant 0 : i32
    return %arg0, %c0_i32 : i32, i32
  }
}

</mosaic_0001>

<llo_original>
// kernel: encoder_forward.1
$region0: #{encoder_forward.1}
  #allocation0 [shape = 'u32[]', space=smem, size = 0x4, offset = 0x4, fixed_abs, tag = 'smem constant byte address 0x4 - core index']
  #allocation1 [shape = 'u32[144,128]{1,0:T(1,128)}', space=vmem, size = 0x12000, scoped, tag = 'internal scratch']
  %s0 = inlined_call_operand.vmem [shape: bf16[8,256], index: 0, kind: input, shape index: {}]
  %s1 = inlined_call_operand.hbm [shape: bf16[256,512], index: 1, kind: input, shape index: {}]
  %s2 = inlined_call_operand.vmem [shape: f32[1,512], index: 2, kind: input, shape index: {}]
  %s3 = inlined_call_operand.hbm [shape: bf16[512,256], index: 3, kind: input, shape index: {}]
  %s4 = inlined_call_operand.vmem [shape: f32[1,256], index: 4, kind: input, shape index: {}]
  %s5 = inlined_call_operand.hbm [shape: bf16[256,128], index: 5, kind: input, shape index: {}]
  %s6 = inlined_call_operand.vmem [shape: f32[1,128], index: 6, kind: input, shape index: {}]
  %s7 = inlined_call_operand.hbm [shape: bf16[128,128], index: 7, kind: input, shape index: {}]
  %s8 = inlined_call_operand.vmem [shape: f32[1,128], index: 8, kind: input, shape index: {}]
  %s9 = inlined_call_operand.hbm [shape: f32[8,128], index: 9, kind: output, shape index: {}]
  %s10 = sld [smem:[#allocation0]]
  $region62: #{encoder_forward.1} parent=0
    _
  %s12 = ssub.s32 1, %s10
  %s13 = scalar_select 0, %s12, %s10
  $region1: #{encoder_forward.1} parent=0
    #allocation2 [shape = 'u8[262144]{0}', space=vmem, size = 0x40000, scoped, tag = 'input window, operand 1, single buffered']
    #allocation3 [shape = 's32[1]{0}', space=sflag, size = 0x4, scoped, tag = 'scoped memory for encoder_forward.1']
    #allocation4 [shape = 's32[1]{0}', space=sflag, size = 0x4, scoped, tag = 'scoped memory for encoder_forward.1']
    #allocation5 [shape = 'u8[262144]{0}', space=vmem, size = 0x40000, scoped, tag = 'input window, operand 3, single buffered']
    #allocation6 [shape = 's32[1]{0}', space=sflag, size = 0x4, scoped, tag = 'scoped memory for encoder_forward.1']
    #allocation7 [shape = 'u8[65536]{0}', space=vmem, size = 0x10000, scoped, tag = 'input window, operand 5, single buffered']
    #allocation8 [shape = 'u8[32768]{0}', space=vmem, size = 0x8000, scoped, tag = 'input window, operand 7, single buffered']
    #allocation9 [shape = 's32[1]{0}', space=sflag, size = 0x4, scoped, tag = 'scoped memory for encoder_forward.1']
    #allocation10 [shape = 'u8[4096]{0}', space=vmem, size = 0x1000, scoped, tag = 'output window, operand 0, single buffered']
    %14 = vsyncpa [#allocation3], 0
    %15 = vsyncpa [#allocation6], 0
    %16 = vsyncpa [#allocation9], 0
    %17 = vsyncpa [#allocation4], 0
    // Predicated region
    $region2: #{encoder_forward.1} parent=1 // pred_check
      _
    $region3: #{encoder_forward.1} parent=1 // pred_check_branch
      %19 = sbr.rel (0) target = $region5
    $region4: #{encoder_forward.1} parent=1 // pred_region
      _
    $region5: #{encoder_forward.1} parent=1 // pred_fallthru
      _
    // Predicated region
    $region6: #{encoder_forward.1} parent=1 // pred_check
      _
    $region7: #{encoder_forward.1} parent=1 // pred_check_branch
      %21 = sbr.rel (0) target = $region9
    $region8: #{encoder_forward.1} parent=1 // pred_region
      %s23 = ssub.s32 8192, 8192
      %24 = vsyncadd [#allocation3], %s23
      %s25 = sshll.u32 [#allocation2], 4
      %s26 = int_to_ptr.vmem [resolvable:$true] %s25
      %31 = dma.hbm_to_vmem [thread:$0]  %s1, 8192, %s26, [#allocation3], 256, 256, 16
    $region9: #{encoder_forward.1} parent=1 // pred_fallthru
      _
    // Predicated region
    $region10: #{encoder_forward.1} parent=1 // pred_check
      _
    $region11: #{encoder_forward.1} parent=1 // pred_check_branch
      %33 = sbr.rel (0) target = $region13
    $region12: #{encoder_forward.1} parent=1 // pred_region
      _
    $region13: #{encoder_forward.1} parent=1 // pred_fallthru
      _
    // Predicated region
    $region14: #{encoder_forward.1} parent=1 // pred_check
      _
    $region15: #{encoder_forward.1} parent=1 // pred_check_branch
      %35 = sbr.rel (0) target = $region17
    $region16: #{encoder_forward.1} parent=1 // pred_region
      %s37 = ssub.s32 8192, 8192
      %38 = vsyncadd [#allocation6], %s37
      %s39 = sshll.u32 [#allocation5], 4
      %s40 = int_to_ptr.vmem [resolvable:$true] %s39
      %45 = dma.hbm_to_vmem [thread:$0]  %s3, 8192, %s40, [#allocation6], 128, 128, 8
    $region17: #{encoder_forward.1} parent=1 // pred_fallthru
      _
    // Predicated region
    $region18: #{encoder_forward.1} parent=1 // pred_check
      _
    $region19: #{encoder_forward.1} parent=1 // pred_check_branch
      %47 = sbr.rel (0) target = $region21
    $region20: #{encoder_forward.1} parent=1 // pred_region
      _
    $region21: #{encoder_forward.1} parent=1 // pred_fallthru
      _
    // Predicated region
    $region22: #{encoder_forward.1} parent=1 // pred_check
      _
    $region23: #{encoder_forward.1} parent=1 // pred_check_branch
      %49 = sbr.rel (0) target = $region25
    $region24: #{encoder_forward.1} parent=1 // pred_region
      %s51 = ssub.s32 2048, 2048
      %52 = vsyncadd [#allocation6], %s51
      %s53 = sshll.u32 [#allocation7], 4
      %s54 = int_to_ptr.vmem [resolvable:$true] %s53
      %59 = dma.hbm_to_vmem [thread:$0]  %s5, 2048, %s54, [#allocation6], 64, 64, 4
    $region25: #{encoder_forward.1} parent=1 // pred_fallthru
      _
    // Predicated region
    $region26: #{encoder_forward.1} parent=1 // pred_check
      _
    $region27: #{encoder_forward.1} parent=1 // pred_check_branch
      %61 = sbr.rel (0) target = $region29
    $region28: #{encoder_forward.1} parent=1 // pred_region
      _
    $region29: #{encoder_forward.1} parent=1 // pred_fallthru
      _
    // Predicated region
    $region30: #{encoder_forward.1} parent=1 // pred_check
      _
    $region31: #{encoder_forward.1} parent=1 // pred_check_branch
      %63 = sbr.rel (0) target = $region33
    $region32: #{encoder_forward.1} parent=1 // pred_region
      %s65 = ssub.s32 1024, 1024
      %66 = vsyncadd [#allocation9], %s65
      %s67 = sshll.u32 [#allocation8], 4
      %s68 = int_to_ptr.vmem [resolvable:$true] %s67
      %73 = dma.hbm_to_vmem [thread:$0]  %s7, 1024, %s68, [#allocation9], 64, 64, 4
    $region33: #{encoder_forward.1} parent=1 // pred_fallthru
      _
    // Predicated region
    $region34: #{encoder_forward.1} parent=1 // pred_check
      _
    $region35: #{encoder_forward.1} parent=1 // pred_check_branch
      %75 = sbr.rel (0) target = $region37
    $region36: #{encoder_forward.1} parent=1 // pred_region
      _
    $region37: #{encoder_forward.1} parent=1 // pred_fallthru
      _
    // Predicated region
    $region38: #{encoder_forward.1} parent=1 // pred_check
      _
    $region39: #{encoder_forward.1} parent=1 // pred_check_branch
      %77 = sbr.rel (0) target = $region41
    $region40: #{encoder_forward.1} parent=1 // pred_region
      %78 = dma.done [#allocation3], 8192
    $region41: #{encoder_forward.1} parent=1 // pred_fallthru
      _
    // Predicated region
    $region42: #{encoder_forward.1} parent=1 // pred_check
      _
    $region43: #{encoder_forward.1} parent=1 // pred_check_branch
      %80 = sbr.rel (0) target = $region45
    $region44: #{encoder_forward.1} parent=1 // pred_region
      %81 = dma.done [#allocation6], 8192
    $region45: #{encoder_forward.1} parent=1 // pred_fallthru
      _
    // Predicated region
    $region46: #{encoder_forward.1} parent=1 // pred_check
      _
    $region47: #{encoder_forward.1} parent=1 // pred_check_branch
      %83 = sbr.rel (0) target = $region49
    $region48: #{encoder_forward.1} parent=1 // pred_region
      %84 = dma.done [#allocation6], 2048
    $region49: #{encoder_forward.1} parent=1 // pred_fallthru
      _
    // Predicated region
    $region50: #{encoder_forward.1} parent=1 // pred_check
      _
    $region51: #{encoder_forward.1} parent=1 // pred_check_branch
      %86 = sbr.rel (0) target = $region53
    $region52: #{encoder_forward.1} parent=1 // pred_region
      %87 = dma.done [#allocation9], 1024
    $region53: #{encoder_forward.1} parent=1 // pred_fallthru
      _
    %v89 = vld [vmem:[%s0] sm:$0xff]
    %v90 = vld [vmem:[#allocation2] sm:$0xff]
    %v91 = vld [vmem:[#allocation2 + $0x8] sm:$0xff]
    %v92 = vld [vmem:[#allocation2 + $0x10] sm:$0xff]
    %v93 = vld [vmem:[#allocation2 + $0x18] sm:$0xff]
    %v94 = vld [vmem:[#allocation2 + $0x20] sm:$0xff]
    %v95 = vld [vmem:[#allocation2 + $0x28] sm:$0xff]
    %v96 = vld [vmem:[#allocation2 + $0x30] sm:$0xff]
    %v97 = vld [vmem:[#allocation2 + $0x38] sm:$0xff]
    %v98 = vld [vmem:[#allocation2 + $0x40] sm:$0xff]
    %v99 = vld [vmem:[#allocation2 + $0x48] sm:$0xff]
    %v100 = vld [vmem:[#allocation2 + $0x50] sm:$0xff]
    %v101 = vld [vmem:[#allocation2 + $0x58] sm:$0xff]
    %v102 = vld [vmem:[#allocation2 + $0x60] sm:$0xff]
    %v103 = vld [vmem:[#allocation2 + $0x68] sm:$0xff]
    %v104 = vld [vmem:[#allocation2 + $0x70] sm:$0xff]
    %v105 = vld [vmem:[#allocation2 + $0x78] sm:$0xff]
    %v106 = vld [vmem:[#allocation2 + $0x80] sm:$0xff]
    %v107 = vld [vmem:[#allocation2 + $0x88] sm:$0xff]
    %v108 = vld [vmem:[#allocation2 + $0x90] sm:$0xff]
    %v109 = vld [vmem:[#allocation2 + $0x98] sm:$0xff]
    %v110 = vld [vmem:[#allocation2 + $0xa0] sm:$0xff]
    %v111 = vld [vmem:[#allocation2 + $0xa8] sm:$0xff]
    %v112 = vld [vmem:[#allocation2 + $0xb0] sm:$0xff]
    %v113 = vld [vmem:[#allocation2 + $0xb8] sm:$0xff]
    %v114 = vld [vmem:[#allocation2 + $0xc0] sm:$0xff]
    %v115 = vld [vmem:[#allocation2 + $0xc8] sm:$0xff]
    %v116 = vld [vmem:[#allocation2 + $0xd0] sm:$0xff]
    %v117 = vld [vmem:[#allocation2 + $0xd8] sm:$0xff]
    %v118 = vld [vmem:[#allocation2 + $0xe0] sm:$0xff]
    %v119 = vld [vmem:[#allocation2 + $0xe8] sm:$0xff]
    %v120 = vld [vmem:[#allocation2 + $0xf0] sm:$0xff]
    %v121 = vld [vmem:[#allocation2 + $0xf8] sm:$0xff]
    %v122 = vld [vmem:[#allocation2 + $0x100] sm:$0xff]
    %v123 = vld [vmem:[#allocation2 + $0x108] sm:$0xff]
    %v124 = vld [vmem:[#allocation2 + $0x110] sm:$0xff]
    %v125 = vld [vmem:[#allocation2 + $0x118] sm:$0xff]
    %v126 = vld [vmem:[#allocation2 + $0x120] sm:$0xff]
    %v127 = vld [vmem:[#allocation2 + $0x128] sm:$0xff]
    %v128 = vld [vmem:[#allocation2 + $0x130] sm:$0xff]
    %v129 = vld [vmem:[#allocation2 + $0x138] sm:$0xff]
    %v130 = vld [vmem:[#allocation2 + $0x140] sm:$0xff]
    %v131 = vld [vmem:[#allocation2 + $0x148] sm:$0xff]
    %v132 = vld [vmem:[#allocation2 + $0x150] sm:$0xff]
    %v133 = vld [vmem:[#allocation2 + $0x158] sm:$0xff]
    %v134 = vld [vmem:[#allocation2 + $0x160] sm:$0xff]
    %v135 = vld [vmem:[#allocation2 + $0x168] sm:$0xff]
    %v136 = vld [vmem:[#allocation2 + $0x170] sm:$0xff]
    %v137 = vld [vmem:[#allocation2 + $0x178] sm:$0xff]
    %v138 = vld [vmem:[#allocation2 + $0x180] sm:$0xff]
    %v139 = vld [vmem:[#allocation2 + $0x188] sm:$0xff]
    %v140 = vld [vmem:[#allocation2 + $0x190] sm:$0xff]
    %v141 = vld [vmem:[#allocation2 + $0x198] sm:$0xff]
    %v142 = vld [vmem:[#allocation2 + $0x1a0] sm:$0xff]
    %v143 = vld [vmem:[#allocation2 + $0x1a8] sm:$0xff]
    %v144 = vld [vmem:[#allocation2 + $0x1b0] sm:$0xff]
    %v145 = vld [vmem:[#allocation2 + $0x1b8] sm:$0xff]
    %v146 = vld [vmem:[#allocation2 + $0x1c0] sm:$0xff]
    %v147 = vld [vmem:[#allocation2 + $0x1c8] sm:$0xff]
    %v148 = vld [vmem:[#allocation2 + $0x1d0] sm:$0xff]
    %v149 = vld [vmem:[#allocation2 + $0x1d8] sm:$0xff]
    %v150 = vld [vmem:[#allocation2 + $0x1e0] sm:$0xff]
    %v151 = vld [vmem:[#allocation2 + $0x1e8] sm:$0xff]
    %v152 = vld [vmem:[#allocation2 + $0x1f0] sm:$0xff]
    %v153 = vld [vmem:[#allocation2 + $0x1f8] sm:$0xff]
    %v154 = vld [vmem:[%s2] sm:$0xf]
    %v156 = vlaneseq
    %v157 = vshrl.u32 %v156, 7
    %v158 = vsub.s32 0, %v157
    %v159 = vrot.slane %v154, %v158
    %v160 = vlaneseq
    %v161 = vshrl.u32 %v160, 7
    %v162 = vsub.s32 1, %v161
    %v163 = vrot.slane %v154, %v162
    %v164 = vlaneseq
    %v165 = vshrl.u32 %v164, 7
    %v166 = vsub.s32 2, %v165
    %v167 = vrot.slane %v154, %v166
    %v168 = vlaneseq
    %v169 = vshrl.u32 %v168, 7
    %v170 = vsub.s32 3, %v169
    %v171 = vrot.slane %v154, %v170
    %v177 = vunpack.c.l.b16 %v89
    %v178 = vunpack.c.h.b16 %v89
    %v179 = vpack.c.b16 %v177, %v177
    %v180 = vpack.c.b16 %v178, %v178
    %v247 = vunpack.c.l.b16 %v90
    %v248 = vunpack.c.h.b16 %v90
    %v249 = vunpack.c.l.b16 %v91
    %v250 = vunpack.c.h.b16 %v91
    %v251 = vunpack.c.l.b16 %v92
    %v252 = vunpack.c.h.b16 %v92
    %v253 = vunpack.c.l.b16 %v93
    %v254 = vunpack.c.h.b16 %v93
    %v255 = vunpack.c.l.b16 %v94
    %v256 = vunpack.c.h.b16 %v94
    %v257 = vunpack.c.l.b16 %v95
    %v258 = vunpack.c.h.b16 %v95
    %v259 = vunpack.c.l.b16 %v96
    %v260 = vunpack.c.h.b16 %v96
    %v261 = vunpack.c.l.b16 %v97
    %v262 = vunpack.c.h.b16 %v97
    %v263 = vunpack.c.l.b16 %v98
    %v264 = vunpack.c.h.b16 %v98
    %v265 = vunpack.c.l.b16 %v99
    %v266 = vunpack.c.h.b16 %v99
    %v267 = vunpack.c.l.b16 %v100
    %v268 = vunpack.c.h.b16 %v100
    %v269 = vunpack.c.l.b16 %v101
    %v270 = vunpack.c.h.b16 %v101
    %v271 = vunpack.c.l.b16 %v102
    %v272 = vunpack.c.h.b16 %v102
    %v273 = vunpack.c.l.b16 %v103
    %v274 = vunpack.c.h.b16 %v103
    %v275 = vunpack.c.l.b16 %v104
    %v276 = vunpack.c.h.b16 %v104
    %v277 = vunpack.c.l.b16 %v105
    %v278 = vunpack.c.h.b16 %v105
    %v279 = vunpack.c.l.b16 %v106
    %v280 = vunpack.c.h.b16 %v106
    %v281 = vunpack.c.l.b16 %v107
    %v282 = vunpack.c.h.b16 %v107
    %v283 = vunpack.c.l.b16 %v108
    %v284 = vunpack.c.h.b16 %v108
    %v285 = vunpack.c.l.b16 %v109
    %v286 = vunpack.c.h.b16 %v109
    %v287 = vunpack.c.l.b16 %v110
    %v288 = vunpack.c.h.b16 %v110
    %v289 = vunpack.c.l.b16 %v111
    %v290 = vunpack.c.h.b16 %v111
    %v291 = vunpack.c.l.b16 %v112
    %v292 = vunpack.c.h.b16 %v112
    %v293 = vunpack.c.l.b16 %v113
    %v294 = vunpack.c.h.b16 %v113
    %v295 = vunpack.c.l.b16 %v114
    %v296 = vunpack.c.h.b16 %v114
    %v297 = vunpack.c.l.b16 %v115
    %v298 = vunpack.c.h.b16 %v115
    %v299 = vunpack.c.l.b16 %v116
    %v300 = vunpack.c.h.b16 %v116
    %v301 = vunpack.c.l.b16 %v117
    %v302 = vunpack.c.h.b16 %v117
    %v303 = vunpack.c.l.b16 %v118
    %v304 = vunpack.c.h.b16 %v118
    %v305 = vunpack.c.l.b16 %v119
    %v306 = vunpack.c.h.b16 %v119
    %v307 = vunpack.c.l.b16 %v120
    %v308 = vunpack.c.h.b16 %v120
    %v309 = vunpack.c.l.b16 %v121
    %v310 = vunpack.c.h.b16 %v121
    %v311 = vunpack.c.l.b16 %v122
    %v312 = vunpack.c.h.b16 %v122
    %v313 = vunpack.c.l.b16 %v123
    %v314 = vunpack.c.h.b16 %v123
    %v315 = vunpack.c.l.b16 %v124
    %v316 = vunpack.c.h.b16 %v124
    %v317 = vunpack.c.l.b16 %v125
    %v318 = vunpack.c.h.b16 %v125
    %v319 = vunpack.c.l.b16 %v126
    %v320 = vunpack.c.h.b16 %v126
    %v321 = vunpack.c.l.b16 %v127
    %v322 = vunpack.c.h.b16 %v127
    %v323 = vunpack.c.l.b16 %v128
    %v324 = vunpack.c.h.b16 %v128
    %v325 = vunpack.c.l.b16 %v129
    %v326 = vunpack.c.h.b16 %v129
    %v327 = vunpack.c.l.b16 %v130
    %v328 = vunpack.c.h.b16 %v130
    %v329 = vunpack.c.l.b16 %v131
    %v330 = vunpack.c.h.b16 %v131
    %v331 = vunpack.c.l.b16 %v132
    %v332 = vunpack.c.h.b16 %v132
    %v333 = vunpack.c.l.b16 %v133
    %v334 = vunpack.c.h.b16 %v133
    %v335 = vunpack.c.l.b16 %v134
    %v336 = vunpack.c.h.b16 %v134
    %v337 = vunpack.c.l.b16 %v135
    %v338 = vunpack.c.h.b16 %v135
    %v339 = vunpack.c.l.b16 %v136
    %v340 = vunpack.c.h.b16 %v136
    %v341 = vunpack.c.l.b16 %v137
    %v342 = vunpack.c.h.b16 %v137
    %v343 = vunpack.c.l.b16 %v138
    %v344 = vunpack.c.h.b16 %v138
    %v345 = vunpack.c.l.b16 %v139
    %v346 = vunpack.c.h.b16 %v139
    %v347 = vunpack.c.l.b16 %v140
    %v348 = vunpack.c.h.b16 %v140
    %v349 = vunpack.c.l.b16 %v141
    %v350 = vunpack.c.h.b16 %v141
    %v351 = vunpack.c.l.b16 %v142
    %v352 = vunpack.c.h.b16 %v142
    %v353 = vunpack.c.l.b16 %v143
    %v354 = vunpack.c.h.b16 %v143
    %v355 = vunpack.c.l.b16 %v144
    %v356 = vunpack.c.h.b16 %v144
    %v357 = vunpack.c.l.b16 %v145
    %v358 = vunpack.c.h.b16 %v145
    %v359 = vunpack.c.l.b16 %v146
    %v360 = vunpack.c.h.b16 %v146
    %v361 = vunpack.c.l.b16 %v147
    %v362 = vunpack.c.h.b16 %v147
    %v363 = vunpack.c.l.b16 %v148
    %v364 = vunpack.c.h.b16 %v148
    %v365 = vunpack.c.l.b16 %v149
    %v366 = vunpack.c.h.b16 %v149
    %v367 = vunpack.c.l.b16 %v150
    %v368 = vunpack.c.h.b16 %v150
    %v369 = vunpack.c.l.b16 %v151
    %v370 = vunpack.c.h.b16 %v151
    %v371 = vunpack.c.l.b16 %v152
    %v372 = vunpack.c.h.b16 %v152
    %v373 = vunpack.c.l.b16 %v153
    %v374 = vunpack.c.h.b16 %v153
    %v375 = vpack.c.b16 %v251, %v247
    %v376 = vpack.c.b16 %v252, %v248
    %v377 = vpack.c.b16 %v253, %v249
    %v378 = vpack.c.b16 %v254, %v250
    %v379 = vpack.c.b16 %v259, %v255
    %v380 = vpack.c.b16 %v260, %v256
    %v381 = vpack.c.b16 %v261, %v257
    %v382 = vpack.c.b16 %v262, %v258
    %v383 = vpack.c.b16 %v267, %v263
    %v384 = vpack.c.b16 %v268, %v264
    %v385 = vpack.c.b16 %v269, %v265
    %v386 = vpack.c.b16 %v270, %v266
    %v387 = vpack.c.b16 %v275, %v271
    %v388 = vpack.c.b16 %v276, %v272
    %v389 = vpack.c.b16 %v277, %v273
    %v390 = vpack.c.b16 %v278, %v274
    %v391 = vpack.c.b16 %v283, %v279
    %v392 = vpack.c.b16 %v284, %v280
    %v393 = vpack.c.b16 %v285, %v281
    %v394 = vpack.c.b16 %v286, %v282
    %v395 = vpack.c.b16 %v291, %v287
    %v396 = vpack.c.b16 %v292, %v288
    %v397 = vpack.c.b16 %v293, %v289
    %v398 = vpack.c.b16 %v294, %v290
    %v399 = vpack.c.b16 %v299, %v295
    %v400 = vpack.c.b16 %v300, %v296
    %v401 = vpack.c.b16 %v301, %v297
    %v402 = vpack.c.b16 %v302, %v298
    %v403 = vpack.c.b16 %v307, %v303
    %v404 = vpack.c.b16 %v308, %v304
    %v405 = vpack.c.b16 %v309, %v305
    %v406 = vpack.c.b16 %v310, %v306
    %v407 = vpack.c.b16 %v315, %v311
    %v408 = vpack.c.b16 %v316, %v312
    %v409 = vpack.c.b16 %v317, %v313
    %v410 = vpack.c.b16 %v318, %v314
    %v411 = vpack.c.b16 %v323, %v319
    %v412 = vpack.c.b16 %v324, %v320
    %v413 = vpack.c.b16 %v325, %v321
    %v414 = vpack.c.b16 %v326, %v322
    %v415 = vpack.c.b16 %v331, %v327
    %v416 = vpack.c.b16 %v332, %v328
    %v417 = vpack.c.b16 %v333, %v329
    %v418 = vpack.c.b16 %v334, %v330
    %v419 = vpack.c.b16 %v339, %v335
    %v420 = vpack.c.b16 %v340, %v336
    %v421 = vpack.c.b16 %v341, %v337
    %v422 = vpack.c.b16 %v342, %v338
    %v423 = vpack.c.b16 %v347, %v343
    %v424 = vpack.c.b16 %v348, %v344
    %v425 = vpack.c.b16 %v349, %v345
    %v426 = vpack.c.b16 %v350, %v346
    %v427 = vpack.c.b16 %v355, %v351
    %v428 = vpack.c.b16 %v356, %v352
    %v429 = vpack.c.b16 %v357, %v353
    %v430 = vpack.c.b16 %v358, %v354
    %v431 = vpack.c.b16 %v363, %v359
    %v432 = vpack.c.b16 %v364, %v360
    %v433 = vpack.c.b16 %v365, %v361
    %v434 = vpack.c.b16 %v366, %v362
    %v435 = vpack.c.b16 %v371, %v367
    %v436 = vpack.c.b16 %v372, %v368
    %v437 = vpack.c.b16 %v373, %v369
    %v438 = vpack.c.b16 %v374, %v370
    %503 = vmatprep.subr.bf16.mxu0 %v376
    %504 = vmatpush1.bf16.msra.mxu0 %v375
    %505 = vmatprep.subr.bf16.mxu0 %v380
    %506 = vmatpush1.bf16.msra.mxu0 %v379
    %507 = vmatprep.subr.bf16.mxu0 %v384
    %508 = vmatpush1.bf16.msra.mxu0 %v383
    %509 = vmatprep.subr.bf16.mxu0 %v388
    %510 = vmatpush1.bf16.msra.mxu0 %v387
    %511 = vmatprep.subr.bf16.mxu0 %v392
    %512 = vmatpush1.bf16.msra.mxu0 %v391
    %513 = vmatprep.subr.bf16.mxu0 %v396
    %514 = vmatpush1.bf16.msra.mxu0 %v395
    %515 = vmatprep.subr.bf16.mxu0 %v400
    %516 = vmatpush1.bf16.msra.mxu0 %v399
    %517 = vmatprep.subr.bf16.mxu0 %v404
    %518 = vmatpush1.bf16.msra.mxu0 %v403
    %519 = vmatprep.subr.bf16.mxu0 %v408
    %520 = vmatpush1.bf16.msra.mxu0 %v407
    %521 = vmatprep.subr.bf16.mxu0 %v412
    %522 = vmatpush1.bf16.msra.mxu0 %v411
    %523 = vmatprep.subr.bf16.mxu0 %v416
    %524 = vmatpush1.bf16.msra.mxu0 %v415
    %525 = vmatprep.subr.bf16.mxu0 %v420
    %526 = vmatpush1.bf16.msra.mxu0 %v419
    %527 = vmatprep.subr.bf16.mxu0 %v424
    %528 = vmatpush1.bf16.msra.mxu0 %v423
    %529 = vmatprep.subr.bf16.mxu0 %v428
    %530 = vmatpush1.bf16.msra.mxu0 %v427
    %531 = vmatprep.subr.bf16.mxu0 %v432
    %532 = vmatpush1.bf16.msra.mxu0 %v431
    %533 = vmatprep.subr.bf16.mxu0 %v436
    %534 = vmatpush1.bf16.msra.mxu0 %v435
    %535 = vmatprep.mubr.bf16.mxu0 %v180
    %536 = vmatmul.mubr.bf16.gmra.mrb[0].mxu0 %v179
    %v537 = vpop.f32.mrb[0].mxu0
    %v538 = vadd.f32 %v159, %v537
    %v539 = vpop.f32.mrb[0].mxu0
    %v540 = vadd.f32 %v163, %v539
    %v541 = vpop.f32.mrb[0].mxu0
    %v542 = vpop.f32.mrb[0].mxu0
    %543 = vdwg.mxu0
    %544 = vmatprep.subr.bf16.mxu0 %v378
    %545 = vmatpush1.bf16.msra.mxu0 %v377
    %546 = vmatprep.subr.bf16.mxu0 %v382
    %547 = vmatpush1.bf16.msra.mxu0 %v381
    %548 = vmatprep.subr.bf16.mxu0 %v386
    %549 = vmatpush1.bf16.msra.mxu0 %v385
    %550 = vmatprep.subr.bf16.mxu0 %v390
    %551 = vmatpush1.bf16.msra.mxu0 %v389
    %552 = vmatprep.subr.bf16.mxu0 %v394
    %553 = vmatpush1.bf16.msra.mxu0 %v393
    %554 = vmatprep.subr.bf16.mxu0 %v398
    %555 = vmatpush1.bf16.msra.mxu0 %v397
    %556 = vmatprep.subr.bf16.mxu0 %v402
    %557 = vmatpush1.bf16.msra.mxu0 %v401
    %558 = vmatprep.subr.bf16.mxu0 %v406
    %559 = vmatpush1.bf16.msra.mxu0 %v405
    %560 = vmatprep.subr.bf16.mxu0 %v410
    %561 = vmatpush1.bf16.msra.mxu0 %v409
    %562 = vmatprep.subr.bf16.mxu0 %v414
    %563 = vmatpush1.bf16.msra.mxu0 %v413
    %564 = vmatprep.subr.bf16.mxu0 %v418
    %565 = vmatpush1.bf16.msra.mxu0 %v417
    %566 = vmatprep.subr.bf16.mxu0 %v422
    %567 = vmatpush1.bf16.msra.mxu0 %v421
    %568 = vmatprep.subr.bf16.mxu0 %v426
    %569 = vmatpush1.bf16.msra.mxu0 %v425
    %570 = vmatprep.subr.bf16.mxu0 %v430
    %571 = vmatpush1.bf16.msra.mxu0 %v429
    %572 = vmatprep.subr.bf16.mxu0 %v434
    %573 = vmatpush1.bf16.msra.mxu0 %v433
    %574 = vmatprep.subr.bf16.mxu0 %v438
    %575 = vmatpush1.bf16.msra.mxu0 %v437
    %576 = vmatprep.mubr.bf16.mxu0 %v180
    %577 = vmatmul.mubr.bf16.gmra.mrb[0].mxu0 %v179
    %v578 = vpop.f32.mrb[0].mxu0
    %v579 = vadd.f32 %v167, %v578
    %v580 = vpop.f32.mrb[0].mxu0
    %v581 = vadd.f32 %v171, %v580
    %v582 = vpop.f32.mrb[0].mxu0
    %v583 = vpop.f32.mrb[0].mxu0
    %584 = vdwg.mxu0
    %v585 = vmax.f32 %v538, 0.0
    %v586 = vmax.f32 %v540, 0.0
    %v587 = vmax.f32 %v579, 0.0
    %v588 = vmax.f32 %v581, 0.0
    %v589 = vpack.c.bf16 %v585, %v585
    %v590 = vpack.c.bf16 %v586, %v586
    %v591 = vpack.c.bf16 %v587, %v587
    %v592 = vpack.c.bf16 %v588, %v588
    %v593 = vld [vmem:[#allocation5] sm:$0xff]
    %v594 = vld [vmem:[#allocation5 + $0x8] sm:$0xff]
    %v595 = vld [vmem:[#allocation5 + $0x10] sm:$0xff]
    %v596 = vld [vmem:[#allocation5 + $0x18] sm:$0xff]
    %v597 = vld [vmem:[#allocation5 + $0x20] sm:$0xff]
    %v598 = vld [vmem:[#allocation5 + $0x28] sm:$0xff]
    %v599 = vld [vmem:[#allocation5 + $0x30] sm:$0xff]
    %v600 = vld [vmem:[#allocation5 + $0x38] sm:$0xff]
    %v601 = vld [vmem:[#allocation5 + $0x40] sm:$0xff]
    %v602 = vld [vmem:[#allocation5 + $0x48] sm:$0xff]
    %v603 = vld [vmem:[#allocation5 + $0x50] sm:$0xff]
    %v604 = vld [vmem:[#allocation5 + $0x58] sm:$0xff]
    %v605 = vld [vmem:[#allocation5 + $0x60] sm:$0xff]
    %v606 = vld [vmem:[#allocation5 + $0x68] sm:$0xff]
    %v607 = vld [vmem:[#allocation5 + $0x70] sm:$0xff]
    %v608 = vld [vmem:[#allocation5 + $0x78] sm:$0xff]
    %v609 = vld [vmem:[#allocation5 + $0x80] sm:$0xff]
    %v610 = vld [vmem:[#allocation5 + $0x88] sm:$0xff]
    %v611 = vld [vmem:[#allocation5 + $0x90] sm:$0xff]
    %v612 = vld [vmem:[#allocation5 + $0x98] sm:$0xff]
    %v613 = vld [vmem:[#allocation5 + $0xa0] sm:$0xff]
    %v614 = vld [vmem:[#allocation5 + $0xa8] sm:$0xff]
    %v615 = vld [vmem:[#allocation5 + $0xb0] sm:$0xff]
    %v616 = vld [vmem:[#allocation5 + $0xb8] sm:$0xff]
    %v617 = vld [vmem:[#allocation5 + $0xc0] sm:$0xff]
    %v618 = vld [vmem:[#allocation5 + $0xc8] sm:$0xff]
    %v619 = vld [vmem:[#allocation5 + $0xd0] sm:$0xff]
    %v620 = vld [vmem:[#allocation5 + $0xd8] sm:$0xff]
    %v621 = vld [vmem:[#allocation5 + $0xe0] sm:$0xff]
    %v622 = vld [vmem:[#allocation5 + $0xe8] sm:$0xff]
    %v623 = vld [vmem:[#allocation5 + $0xf0] sm:$0xff]
    %v624 = vld [vmem:[#allocation5 + $0xf8] sm:$0xff]
    %v625 = vld [vmem:[#allocation5 + $0x100] sm:$0xff]
    %v626 = vld [vmem:[#allocation5 + $0x108] sm:$0xff]
    %v627 = vld [vmem:[#allocation5 + $0x110] sm:$0xff]
    %v628 = vld [vmem:[#allocation5 + $0x118] sm:$0xff]
    %v629 = vld [vmem:[#allocation5 + $0x120] sm:$0xff]
    %v630 = vld [vmem:[#allocation5 + $0x128] sm:$0xff]
    %v631 = vld [vmem:[#allocation5 + $0x130] sm:$0xff]
    %v632 = vld [vmem:[#allocation5 + $0x138] sm:$0xff]
    %v633 = vld [vmem:[#allocation5 + $0x140] sm:$0xff]
    %v634 = vld [vmem:[#allocation5 + $0x148] sm:$0xff]
    %v635 = vld [vmem:[#allocation5 + $0x150] sm:$0xff]
    %v636 = vld [vmem:[#allocation5 + $0x158] sm:$0xff]
    %v637 = vld [vmem:[#allocation5 + $0x160] sm:$0xff]
    %v638 = vld [vmem:[#allocation5 + $0x168] sm:$0xff]
    %v639 = vld [vmem:[#allocation5 + $0x170] sm:$0xff]
    %v640 = vld [vmem:[#allocation5 + $0x178] sm:$0xff]
    %v641 = vld [vmem:[#allocation5 + $0x180] sm:$0xff]
    %v642 = vld [vmem:[#allocation5 + $0x188] sm:$0xff]
    %v643 = vld [vmem:[#allocation5 + $0x190] sm:$0xff]
    %v644 = vld [vmem:[#allocation5 + $0x198] sm:$0xff]
    %v645 = vld [vmem:[#allocation5 + $0x1a0] sm:$0xff]
    %v646 = vld [vmem:[#allocation5 + $0x1a8] sm:$0xff]
    %v647 = vld [vmem:[#allocation5 + $0x1b0] sm:$0xff]
    %v648 = vld [vmem:[#allocation5 + $0x1b8] sm:$0xff]
    %v649 = vld [vmem:[#allocation5 + $0x1c0] sm:$0xff]
    %v650 = vld [vmem:[#allocation5 + $0x1c8] sm:$0xff]
    %v651 = vld [vmem:[#allocation5 + $0x1d0] sm:$0xff]
    %v652 = vld [vmem:[#allocation5 + $0x1d8] sm:$0xff]
    %v653 = vld [vmem:[#allocation5 + $0x1e0] sm:$0xff]
    %v654 = vld [vmem:[#allocation5 + $0x1e8] sm:$0xff]
    %v655 = vld [vmem:[#allocation5 + $0x1f0] sm:$0xff]
    %v656 = vld [vmem:[#allocation5 + $0x1f8] sm:$0xff]
    %v657 = vld [vmem:[%s4] sm:$0x3]
    %v659 = vlaneseq
    %v660 = vshrl.u32 %v659, 7
    %v661 = vsub.s32 0, %v660
    %v662 = vrot.slane %v657, %v661
    %v663 = vlaneseq
    %v664 = vshrl.u32 %v663, 7
    %v665 = vsub.s32 1, %v664
    %v666 = vrot.slane %v657, %v665
    %v733 = vunpack.c.l.b16 %v593
    %v734 = vunpack.c.h.b16 %v593
    %v735 = vunpack.c.l.b16 %v594
    %v736 = vunpack.c.h.b16 %v594
    %v737 = vunpack.c.l.b16 %v595
    %v738 = vunpack.c.h.b16 %v595
    %v739 = vunpack.c.l.b16 %v596
    %v740 = vunpack.c.h.b16 %v596
    %v741 = vunpack.c.l.b16 %v597
    %v742 = vunpack.c.h.b16 %v597
    %v743 = vunpack.c.l.b16 %v598
    %v744 = vunpack.c.h.b16 %v598
    %v745 = vunpack.c.l.b16 %v599
    %v746 = vunpack.c.h.b16 %v599
    %v747 = vunpack.c.l.b16 %v600
    %v748 = vunpack.c.h.b16 %v600
    %v749 = vunpack.c.l.b16 %v601
    %v750 = vunpack.c.h.b16 %v601
    %v751 = vunpack.c.l.b16 %v602
    %v752 = vunpack.c.h.b16 %v602
    %v753 = vunpack.c.l.b16 %v603
    %v754 = vunpack.c.h.b16 %v603
    %v755 = vunpack.c.l.b16 %v604
    %v756 = vunpack.c.h.b16 %v604
    %v757 = vunpack.c.l.b16 %v605
    %v758 = vunpack.c.h.b16 %v605
    %v759 = vunpack.c.l.b16 %v606
    %v760 = vunpack.c.h.b16 %v606
    %v761 = vunpack.c.l.b16 %v607
    %v762 = vunpack.c.h.b16 %v607
    %v763 = vunpack.c.l.b16 %v608
    %v764 = vunpack.c.h.b16 %v608
    %v765 = vunpack.c.l.b16 %v609
    %v766 = vunpack.c.h.b16 %v609
    %v767 = vunpack.c.l.b16 %v610
    %v768 = vunpack.c.h.b16 %v610
    %v769 = vunpack.c.l.b16 %v611
    %v770 = vunpack.c.h.b16 %v611
    %v771 = vunpack.c.l.b16 %v612
    %v772 = vunpack.c.h.b16 %v612
    %v773 = vunpack.c.l.b16 %v613
    %v774 = vunpack.c.h.b16 %v613
    %v775 = vunpack.c.l.b16 %v614
    %v776 = vunpack.c.h.b16 %v614
    %v777 = vunpack.c.l.b16 %v615
    %v778 = vunpack.c.h.b16 %v615
    %v779 = vunpack.c.l.b16 %v616
    %v780 = vunpack.c.h.b16 %v616
    %v781 = vunpack.c.l.b16 %v617
    %v782 = vunpack.c.h.b16 %v617
    %v783 = vunpack.c.l.b16 %v618
    %v784 = vunpack.c.h.b16 %v618
    %v785 = vunpack.c.l.b16 %v619
    %v786 = vunpack.c.h.b16 %v619
    %v787 = vunpack.c.l.b16 %v620
    %v788 = vunpack.c.h.b16 %v620
    %v789 = vunpack.c.l.b16 %v621
    %v790 = vunpack.c.h.b16 %v621
    %v791 = vunpack.c.l.b16 %v622
    %v792 = vunpack.c.h.b16 %v622
    %v793 = vunpack.c.l.b16 %v623
    %v794 = vunpack.c.h.b16 %v623
    %v795 = vunpack.c.l.b16 %v624
    %v796 = vunpack.c.h.b16 %v624
    %v797 = vunpack.c.l.b16 %v625
    %v798 = vunpack.c.h.b16 %v625
    %v799 = vunpack.c.l.b16 %v626
    %v800 = vunpack.c.h.b16 %v626
    %v801 = vunpack.c.l.b16 %v627
    %v802 = vunpack.c.h.b16 %v627
    %v803 = vunpack.c.l.b16 %v628
    %v804 = vunpack.c.h.b16 %v628
    %v805 = vunpack.c.l.b16 %v629
    %v806 = vunpack.c.h.b16 %v629
    %v807 = vunpack.c.l.b16 %v630
    %v808 = vunpack.c.h.b16 %v630
    %v809 = vunpack.c.l.b16 %v631
    %v810 = vunpack.c.h.b16 %v631
    %v811 = vunpack.c.l.b16 %v632
    %v812 = vunpack.c.h.b16 %v632
    %v813 = vunpack.c.l.b16 %v633
    %v814 = vunpack.c.h.b16 %v633
    %v815 = vunpack.c.l.b16 %v634
    %v816 = vunpack.c.h.b16 %v634
    %v817 = vunpack.c.l.b16 %v635
    %v818 = vunpack.c.h.b16 %v635
    %v819 = vunpack.c.l.b16 %v636
    %v820 = vunpack.c.h.b16 %v636
    %v821 = vunpack.c.l.b16 %v637
    %v822 = vunpack.c.h.b16 %v637
    %v823 = vunpack.c.l.b16 %v638
    %v824 = vunpack.c.h.b16 %v638
    %v825 = vunpack.c.l.b16 %v639
    %v826 = vunpack.c.h.b16 %v639
    %v827 = vunpack.c.l.b16 %v640
    %v828 = vunpack.c.h.b16 %v640
    %v829 = vunpack.c.l.b16 %v641
    %v830 = vunpack.c.h.b16 %v641
    %v831 = vunpack.c.l.b16 %v642
    %v832 = vunpack.c.h.b16 %v642
    %v833 = vunpack.c.l.b16 %v643
    %v834 = vunpack.c.h.b16 %v643
    %v835 = vunpack.c.l.b16 %v644
    %v836 = vunpack.c.h.b16 %v644
    %v837 = vunpack.c.l.b16 %v645
    %v838 = vunpack.c.h.b16 %v645
    %v839 = vunpack.c.l.b16 %v646
    %v840 = vunpack.c.h.b16 %v646
    %v841 = vunpack.c.l.b16 %v647
    %v842 = vunpack.c.h.b16 %v647
    %v843 = vunpack.c.l.b16 %v648
    %v844 = vunpack.c.h.b16 %v648
    %v845 = vunpack.c.l.b16 %v649
    %v846 = vunpack.c.h.b16 %v649
    %v847 = vunpack.c.l.b16 %v650
    %v848 = vunpack.c.h.b16 %v650
    %v849 = vunpack.c.l.b16 %v651
    %v850 = vunpack.c.h.b16 %v651
    %v851 = vunpack.c.l.b16 %v652
    %v852 = vunpack.c.h.b16 %v652
    %v853 = vunpack.c.l.b16 %v653
    %v854 = vunpack.c.h.b16 %v653
    %v855 = vunpack.c.l.b16 %v654
    %v856 = vunpack.c.h.b16 %v654
    %v857 = vunpack.c.l.b16 %v655
    %v858 = vunpack.c.h.b16 %v655
    %v859 = vunpack.c.l.b16 %v656
    %v860 = vunpack.c.h.b16 %v656
    %v861 = vpack.c.b16 %v735, %v733
    %v862 = vpack.c.b16 %v736, %v734
    %v863 = vpack.c.b16 %v739, %v737
    %v864 = vpack.c.b16 %v740, %v738
    %v865 = vpack.c.b16 %v743, %v741
    %v866 = vpack.c.b16 %v744, %v742
    %v867 = vpack.c.b16 %v747, %v745
    %v868 = vpack.c.b16 %v748, %v746
    %v869 = vpack.c.b16 %v751, %v749
    %v870 = vpack.c.b16 %v752, %v750
    %v871 = vpack.c.b16 %v755, %v753
    %v872 = vpack.c.b16 %v756, %v754
    %v873 = vpack.c.b16 %v759, %v757
    %v874 = vpack.c.b16 %v760, %v758
    %v875 = vpack.c.b16 %v763, %v761
    %v876 = vpack.c.b16 %v764, %v762
    %v877 = vpack.c.b16 %v767, %v765
    %v878 = vpack.c.b16 %v768, %v766
    %v879 = vpack.c.b16 %v771, %v769
    %v880 = vpack.c.b16 %v772, %v770
    %v881 = vpack.c.b16 %v775, %v773
    %v882 = vpack.c.b16 %v776, %v774
    %v883 = vpack.c.b16 %v779, %v777
    %v884 = vpack.c.b16 %v780, %v778
    %v885 = vpack.c.b16 %v783, %v781
    %v886 = vpack.c.b16 %v784, %v782
    %v887 = vpack.c.b16 %v787, %v785
    %v888 = vpack.c.b16 %v788, %v786
    %v889 = vpack.c.b16 %v791, %v789
    %v890 = vpack.c.b16 %v792, %v790
    %v891 = vpack.c.b16 %v795, %v793
    %v892 = vpack.c.b16 %v796, %v794
    %v893 = vpack.c.b16 %v799, %v797
    %v894 = vpack.c.b16 %v800, %v798
    %v895 = vpack.c.b16 %v803, %v801
    %v896 = vpack.c.b16 %v804, %v802
    %v897 = vpack.c.b16 %v807, %v805
    %v898 = vpack.c.b16 %v808, %v806
    %v899 = vpack.c.b16 %v811, %v809
    %v900 = vpack.c.b16 %v812, %v810
    %v901 = vpack.c.b16 %v815, %v813
    %v902 = vpack.c.b16 %v816, %v814
    %v903 = vpack.c.b16 %v819, %v817
    %v904 = vpack.c.b16 %v820, %v818
    %v905 = vpack.c.b16 %v823, %v821
    %v906 = vpack.c.b16 %v824, %v822
    %v907 = vpack.c.b16 %v827, %v825
    %v908 = vpack.c.b16 %v828, %v826
    %v909 = vpack.c.b16 %v831, %v829
    %v910 = vpack.c.b16 %v832, %v830
    %v911 = vpack.c.b16 %v835, %v833
    %v912 = vpack.c.b16 %v836, %v834
    %v913 = vpack.c.b16 %v839, %v837
    %v914 = vpack.c.b16 %v840, %v838
    %v915 = vpack.c.b16 %v843, %v841
    %v916 = vpack.c.b16 %v844, %v842
    %v917 = vpack.c.b16 %v847, %v845
    %v918 = vpack.c.b16 %v848, %v846
    %v919 = vpack.c.b16 %v851, %v849
    %v920 = vpack.c.b16 %v852, %v850
    %v921 = vpack.c.b16 %v855, %v853
    %v922 = vpack.c.b16 %v856, %v854
    %v923 = vpack.c.b16 %v859, %v857
    %v924 = vpack.c.b16 %v860, %v858
    %989 = vmatprep.subr.bf16.mxu0 %v862
    %990 = vmatpush1.bf16.msra.mxu0 %v861
    %991 = vmatprep.subr.bf16.mxu0 %v864
    %992 = vmatpush1.bf16.msra.mxu0 %v863
    %993 = vmatprep.subr.bf16.mxu0 %v866
    %994 = vmatpush1.bf16.msra.mxu0 %v865
    %995 = vmatprep.subr.bf16.mxu0 %v868
    %996 = vmatpush1.bf16.msra.mxu0 %v867
    %997 = vmatprep.subr.bf16.mxu0 %v870
    %998 = vmatpush1.bf16.msra.mxu0 %v869
    %999 = vmatprep.subr.bf16.mxu0 %v872
    %1000 = vmatpush1.bf16.msra.mxu0 %v871
    %1001 = vmatprep.subr.bf16.mxu0 %v874
    %1002 = vmatpush1.bf16.msra.mxu0 %v873
    %1003 = vmatprep.subr.bf16.mxu0 %v876
    %1004 = vmatpush1.bf16.msra.mxu0 %v875
    %1005 = vmatprep.subr.bf16.mxu0 %v878
    %1006 = vmatpush1.bf16.msra.mxu0 %v877
    %1007 = vmatprep.subr.bf16.mxu0 %v880
    %1008 = vmatpush1.bf16.msra.mxu0 %v879
    %1009 = vmatprep.subr.bf16.mxu0 %v882
    %1010 = vmatpush1.bf16.msra.mxu0 %v881
    %1011 = vmatprep.subr.bf16.mxu0 %v884
    %1012 = vmatpush1.bf16.msra.mxu0 %v883
    %1013 = vmatprep.subr.bf16.mxu0 %v886
    %1014 = vmatpush1.bf16.msra.mxu0 %v885
    %1015 = vmatprep.subr.bf16.mxu0 %v888
    %1016 = vmatpush1.bf16.msra.mxu0 %v887
    %1017 = vmatprep.subr.bf16.mxu0 %v890
    %1018 = vmatpush1.bf16.msra.mxu0 %v889
    %1019 = vmatprep.subr.bf16.mxu0 %v892
    %1020 = vmatpush1.bf16.msra.mxu0 %v891
    %1021 = vmatprep.mubr.bf16.mxu0 %v590
    %1022 = vmatmul.mubr.bf16.gmra.mrb[0].mxu0 %v589
    %v1023 = vpop.f32.mrb[0].mxu0
    %v1024 = vadd.f32 %v662, %v1023
    %v1025 = vpop.f32.mrb[0].mxu0
    %v1026 = vadd.f32 %v666, %v1025
    %v1027 = vpop.f32.mrb[0].mxu0
    %v1028 = vpop.f32.mrb[0].mxu0
    %1029 = vdwg.mxu0
    %1030 = vmatprep.subr.bf16.mxu0 %v894
    %1031 = vmatpush1.bf16.msra.mxu0 %v893
    %1032 = vmatprep.subr.bf16.mxu0 %v896
    %1033 = vmatpush1.bf16.msra.mxu0 %v895
    %1034 = vmatprep.subr.bf16.mxu0 %v898
    %1035 = vmatpush1.bf16.msra.mxu0 %v897
    %1036 = vmatprep.subr.bf16.mxu0 %v900
    %1037 = vmatpush1.bf16.msra.mxu0 %v899
    %1038 = vmatprep.subr.bf16.mxu0 %v902
    %1039 = vmatpush1.bf16.msra.mxu0 %v901
    %1040 = vmatprep.subr.bf16.mxu0 %v904
    %1041 = vmatpush1.bf16.msra.mxu0 %v903
    %1042 = vmatprep.subr.bf16.mxu0 %v906
    %1043 = vmatpush1.bf16.msra.mxu0 %v905
    %1044 = vmatprep.subr.bf16.mxu0 %v908
    %1045 = vmatpush1.bf16.msra.mxu0 %v907
    %1046 = vmatprep.subr.bf16.mxu0 %v910
    %1047 = vmatpush1.bf16.msra.mxu0 %v909
    %1048 = vmatprep.subr.bf16.mxu0 %v912
    %1049 = vmatpush1.bf16.msra.mxu0 %v911
    %1050 = vmatprep.subr.bf16.mxu0 %v914
    %1051 = vmatpush1.bf16.msra.mxu0 %v913
    %1052 = vmatprep.subr.bf16.mxu0 %v916
    %1053 = vmatpush1.bf16.msra.mxu0 %v915
    %1054 = vmatprep.subr.bf16.mxu0 %v918
    %1055 = vmatpush1.bf16.msra.mxu0 %v917
    %1056 = vmatprep.subr.bf16.mxu0 %v920
    %1057 = vmatpush1.bf16.msra.mxu0 %v919
    %1058 = vmatprep.subr.bf16.mxu0 %v922
    %1059 = vmatpush1.bf16.msra.mxu0 %v921
    %1060 = vmatprep.subr.bf16.mxu0 %v924
    %1061 = vmatpush1.bf16.msra.mxu0 %v923
    %1062 = vmatprep.mubr.bf16.mxu0 %v592
    %1063 = vmatmul.mubr.bf16.gmra.mrb[0].mxu0 %v591
    %v1064 = vpop.f32.mrb[0].mxu0
    %v1065 = vadd.f32 %v1024, %v1064
    %v1066 = vpop.f32.mrb[0].mxu0
    %v1067 = vadd.f32 %v1026, %v1066
    %v1068 = vpop.f32.mrb[0].mxu0
    %v1069 = vpop.f32.mrb[0].mxu0
    %1070 = vdwg.mxu0
    %v1071 = vmax.f32 %v1065, 0.0
    %v1072 = vmax.f32 %v1067, 0.0
    %v1073 = vpack.c.bf16 %v1071, %v1071
    %v1074 = vpack.c.bf16 %v1072, %v1072
    %v1075 = vld [vmem:[#allocation7] sm:$0xf]
    %v1076 = vld [vmem:[#allocation7 + $0x4] sm:$0xf]
    %v1077 = vld [vmem:[#allocation7 + $0x8] sm:$0xf]
    %v1078 = vld [vmem:[#allocation7 + $0xc] sm:$0xf]
    %v1079 = vld [vmem:[#allocation7 + $0x10] sm:$0xf]
    %v1080 = vld [vmem:[#allocation7 + $0x14] sm:$0xf]
    %v1081 = vld [vmem:[#allocation7 + $0x18] sm:$0xf]
    %v1082 = vld [vmem:[#allocation7 + $0x1c] sm:$0xf]
    %v1083 = vld [vmem:[#allocation7 + $0x20] sm:$0xf]
    %v1084 = vld [vmem:[#allocation7 + $0x24] sm:$0xf]
    %v1085 = vld [vmem:[#allocation7 + $0x28] sm:$0xf]
    %v1086 = vld [vmem:[#allocation7 + $0x2c] sm:$0xf]
    %v1087 = vld [vmem:[#allocation7 + $0x30] sm:$0xf]
    %v1088 = vld [vmem:[#allocation7 + $0x34] sm:$0xf]
    %v1089 = vld [vmem:[#allocation7 + $0x38] sm:$0xf]
    %v1090 = vld [vmem:[#allocation7 + $0x3c] sm:$0xf]
    %v1091 = vld [vmem:[#allocation7 + $0x40] sm:$0xf]
    %v1092 = vld [vmem:[#allocation7 + $0x44] sm:$0xf]
    %v1093 = vld [vmem:[#allocation7 + $0x48] sm:$0xf]
    %v1094 = vld [vmem:[#allocation7 + $0x4c] sm:$0xf]
    %v1095 = vld [vmem:[#allocation7 + $0x50] sm:$0xf]
    %v1096 = vld [vmem:[#allocation7 + $0x54] sm:$0xf]
    %v1097 = vld [vmem:[#allocation7 + $0x58] sm:$0xf]
    %v1098 = vld [vmem:[#allocation7 + $0x5c] sm:$0xf]
    %v1099 = vld [vmem:[#allocation7 + $0x60] sm:$0xf]
    %v1100 = vld [vmem:[#allocation7 + $0x64] sm:$0xf]
    %v1101 = vld [vmem:[#allocation7 + $0x68] sm:$0xf]
    %v1102 = vld [vmem:[#allocation7 + $0x6c] sm:$0xf]
    %v1103 = vld [vmem:[#allocation7 + $0x70] sm:$0xf]
    %v1104 = vld [vmem:[#allocation7 + $0x74] sm:$0xf]
    %v1105 = vld [vmem:[#allocation7 + $0x78] sm:$0xf]
    %v1106 = vld [vmem:[#allocation7 + $0x7c] sm:$0xf]
    %v1107 = vld [vmem:[%s6] sm:$0x1]
    %v1109 = vlaneseq
    %v1110 = vshrl.u32 %v1109, 7
    %v1111 = vsub.s32 0, %v1110
    %v1112 = vrot.slane %v1107, %v1111
    %v1146 = vunpack.c.l.b16 %v1075
    %v1147 = vunpack.c.l.b16 %v1076
    %v1148 = vunpack.c.l.b16 %v1077
    %v1149 = vunpack.c.l.b16 %v1078
    %v1150 = vunpack.c.l.b16 %v1079
    %v1151 = vunpack.c.l.b16 %v1080
    %v1152 = vunpack.c.l.b16 %v1081
    %v1153 = vunpack.c.l.b16 %v1082
    %v1154 = vunpack.c.l.b16 %v1083
    %v1155 = vunpack.c.l.b16 %v1084
    %v1156 = vunpack.c.l.b16 %v1085
    %v1157 = vunpack.c.l.b16 %v1086
    %v1158 = vunpack.c.l.b16 %v1087
    %v1159 = vunpack.c.l.b16 %v1088
    %v1160 = vunpack.c.l.b16 %v1089
    %v1161 = vunpack.c.l.b16 %v1090
    %v1162 = vunpack.c.l.b16 %v1091
    %v1163 = vunpack.c.l.b16 %v1092
    %v1164 = vunpack.c.l.b16 %v1093
    %v1165 = vunpack.c.l.b16 %v1094
    %v1166 = vunpack.c.l.b16 %v1095
    %v1167 = vunpack.c.l.b16 %v1096
    %v1168 = vunpack.c.l.b16 %v1097
    %v1169 = vunpack.c.l.b16 %v1098
    %v1170 = vunpack.c.l.b16 %v1099
    %v1171 = vunpack.c.l.b16 %v1100
    %v1172 = vunpack.c.l.b16 %v1101
    %v1173 = vunpack.c.l.b16 %v1102
    %v1174 = vunpack.c.l.b16 %v1103
    %v1175 = vunpack.c.l.b16 %v1104
    %v1176 = vunpack.c.l.b16 %v1105
    %v1177 = vunpack.c.l.b16 %v1106
    %v1178 = vpack.c.b16 %v1147, %v1146
    %v1179 = vpack.c.b16 %v1149, %v1148
    %v1180 = vpack.c.b16 %v1151, %v1150
    %v1181 = vpack.c.b16 %v1153, %v1152
    %v1182 = vpack.c.b16 %v1155, %v1154
    %v1183 = vpack.c.b16 %v1157, %v1156
    %v1184 = vpack.c.b16 %v1159, %v1158
    %v1185 = vpack.c.b16 %v1161, %v1160
    %v1186 = vpack.c.b16 %v1163, %v1162
    %v1187 = vpack.c.b16 %v1165, %v1164
    %v1188 = vpack.c.b16 %v1167, %v1166
    %v1189 = vpack.c.b16 %v1169, %v1168
    %v1190 = vpack.c.b16 %v1171, %v1170
    %v1191 = vpack.c.b16 %v1173, %v1172
    %v1192 = vpack.c.b16 %v1175, %v1174
    %v1193 = vpack.c.b16 %v1177, %v1176
    %1210 = vmatprep.subr.bf16.mxu0 0
    %1211 = vmatpush1.bf16.msra.mxu0 %v1178
    %1212 = vmatprep.subr.bf16.mxu0 0
    %1213 = vmatpush1.bf16.msra.mxu0 %v1179
    %1214 = vmatprep.subr.bf16.mxu0 0
    %1215 = vmatpush1.bf16.msra.mxu0 %v1180
    %1216 = vmatprep.subr.bf16.mxu0 0
    %1217 = vmatpush1.bf16.msra.mxu0 %v1181
    %1218 = vmatprep.subr.bf16.mxu0 0
    %1219 = vmatpush1.bf16.msra.mxu0 %v1182
    %1220 = vmatprep.subr.bf16.mxu0 0
    %1221 = vmatpush1.bf16.msra.mxu0 %v1183
    %1222 = vmatprep.subr.bf16.mxu0 0
    %1223 = vmatpush1.bf16.msra.mxu0 %v1184
    %1224 = vmatprep.subr.bf16.mxu0 0
    %1225 = vmatpush1.bf16.msra.mxu0 %v1185
    %1226 = vmatprep.subr.bf16.mxu0 0
    %1227 = vmatpush1.bf16.msra.mxu0 %v1186
    %1228 = vmatprep.subr.bf16.mxu0 0
    %1229 = vmatpush1.bf16.msra.mxu0 %v1187
    %1230 = vmatprep.subr.bf16.mxu0 0
    %1231 = vmatpush1.bf16.msra.mxu0 %v1188
    %1232 = vmatprep.subr.bf16.mxu0 0
    %1233 = vmatpush1.bf16.msra.mxu0 %v1189
    %1234 = vmatprep.subr.bf16.mxu0 0
    %1235 = vmatpush1.bf16.msra.mxu0 %v1190
    %1236 = vmatprep.subr.bf16.mxu0 0
    %1237 = vmatpush1.bf16.msra.mxu0 %v1191
    %1238 = vmatprep.subr.bf16.mxu0 0
    %1239 = vmatpush1.bf16.msra.mxu0 %v1192
    %1240 = vmatprep.subr.bf16.mxu0 0
    %1241 = vmatpush1.bf16.msra.mxu0 %v1193
    %1242 = vmatprep.mubr.bf16.mxu0 %v1074
    %1243 = vmatmul.mubr.bf16.gmra.mrb[0].mxu0 %v1073
    %v1244 = vpop.f32.mrb[0].mxu0
    %v1245 = vadd.f32 %v1112, %v1244
    %v1246 = vpop.f32.mrb[0].mxu0
    %v1247 = vpop.f32.mrb[0].mxu0
    %v1248 = vpop.f32.mrb[0].mxu0
    %1249 = vdwg.mxu0
    %v1250 = vmax.f32 %v1245, 0.0
    %v1251 = vpack.c.bf16 %v1250, %v1250
    %v1252 = vld [vmem:[#allocation8] sm:$0xf]
    %v1253 = vld [vmem:[#allocation8 + $0x4] sm:$0xf]
    %v1254 = vld [vmem:[#allocation8 + $0x8] sm:$0xf]
    %v1255 = vld [vmem:[#allocation8 + $0xc] sm:$0xf]
    %v1256 = vld [vmem:[#allocation8 + $0x10] sm:$0xf]
    %v1257 = vld [vmem:[#allocation8 + $0x14] sm:$0xf]
    %v1258 = vld [vmem:[#allocation8 + $0x18] sm:$0xf]
    %v1259 = vld [vmem:[#allocation8 + $0x1c] sm:$0xf]
    %v1260 = vld [vmem:[#allocation8 + $0x20] sm:$0xf]
    %v1261 = vld [vmem:[#allocation8 + $0x24] sm:$0xf]
    %v1262 = vld [vmem:[#allocation8 + $0x28] sm:$0xf]
    %v1263 = vld [vmem:[#allocation8 + $0x2c] sm:$0xf]
    %v1264 = vld [vmem:[#allocation8 + $0x30] sm:$0xf]
    %v1265 = vld [vmem:[#allocation8 + $0x34] sm:$0xf]
    %v1266 = vld [vmem:[#allocation8 + $0x38] sm:$0xf]
    %v1267 = vld [vmem:[#allocation8 + $0x3c] sm:$0xf]
    %v1268 = vld [vmem:[%s8] sm:$0x1]
    %v1270 = vlaneseq
    %v1271 = vshrl.u32 %v1270, 7
    %v1272 = vsub.s32 0, %v1271
    %v1273 = vrot.slane %v1268, %v1272
    %v1291 = vunpack.c.l.b16 %v1252
    %v1292 = vunpack.c.l.b16 %v1253
    %v1293 = vunpack.c.l.b16 %v1254
    %v1294 = vunpack.c.l.b16 %v1255
    %v1295 = vunpack.c.l.b16 %v1256
    %v1296 = vunpack.c.l.b16 %v1257
    %v1297 = vunpack.c.l.b16 %v1258
    %v1298 = vunpack.c.l.b16 %v1259
    %v1299 = vunpack.c.l.b16 %v1260
    %v1300 = vunpack.c.l.b16 %v1261
    %v1301 = vunpack.c.l.b16 %v1262
    %v1302 = vunpack.c.l.b16 %v1263
    %v1303 = vunpack.c.l.b16 %v1264
    %v1304 = vunpack.c.l.b16 %v1265
    %v1305 = vunpack.c.l.b16 %v1266
    %v1306 = vunpack.c.l.b16 %v1267
    %v1307 = vpack.c.b16 %v1292, %v1291
    %v1308 = vpack.c.b16 %v1294, %v1293
    %v1309 = vpack.c.b16 %v1296, %v1295
    %v1310 = vpack.c.b16 %v1298, %v1297
    %v1311 = vpack.c.b16 %v1300, %v1299
    %v1312 = vpack.c.b16 %v1302, %v1301
    %v1313 = vpack.c.b16 %v1304, %v1303
    %v1314 = vpack.c.b16 %v1306, %v1305
    %1323 = vmatprep.subr.bf16.mxu0 0
    %1324 = vmatpush1.bf16.msra.mxu0 %v1307
    %1325 = vmatprep.subr.bf16.mxu0 0
    %1326 = vmatpush1.bf16.msra.mxu0 %v1308
    %1327 = vmatprep.subr.bf16.mxu0 0
    %1328 = vmatpush1.bf16.msra.mxu0 %v1309
    %1329 = vmatprep.subr.bf16.mxu0 0
    %1330 = vmatpush1.bf16.msra.mxu0 %v1310
    %1331 = vmatprep.subr.bf16.mxu0 0
    %1332 = vmatpush1.bf16.msra.mxu0 %v1311
    %1333 = vmatprep.subr.bf16.mxu0 0
    %1334 = vmatpush1.bf16.msra.mxu0 %v1312
    %1335 = vmatprep.subr.bf16.mxu0 0
    %1336 = vmatpush1.bf16.msra.mxu0 %v1313
    %1337 = vmatprep.subr.bf16.mxu0 0
    %1338 = vmatpush1.bf16.msra.mxu0 %v1314
    %1339 = vmatprep.subr.bf16.mxu0 0
    %1340 = vmatpush1.bf16.msra.mxu0 0
    %1341 = vmatprep.subr.bf16.mxu0 0
    %1342 = vmatpush1.bf16.msra.mxu0 0
    %1343 = vmatprep.subr.bf16.mxu0 0
    %1344 = vmatpush1.bf16.msra.mxu0 0
    %1345 = vmatprep.subr.bf16.mxu0 0
    %1346 = vmatpush1.bf16.msra.mxu0 0
    %1347 = vmatprep.subr.bf16.mxu0 0
    %1348 = vmatpush1.bf16.msra.mxu0 0
    %1349 = vmatprep.subr.bf16.mxu0 0
    %1350 = vmatpush1.bf16.msra.mxu0 0
    %1351 = vmatprep.subr.bf16.mxu0 0
    %1352 = vmatpush1.bf16.msra.mxu0 0
    %1353 = vmatprep.subr.bf16.mxu0 0
    %1354 = vmatpush1.bf16.msra.mxu0 0
    %1355 = vmatprep.mubr.bf16.mxu0 0
    %1356 = vmatmul.mubr.bf16.gmra.mrb[0].mxu0 %v1251
    %v1357 = vpop.f32.mrb[0].mxu0
    %v1358 = vadd.f32 %v1273, %v1357
    %v1359 = vpop.f32.mrb[0].mxu0
    %v1360 = vpop.f32.mrb[0].mxu0
    %v1361 = vpop.f32.mrb[0].mxu0
    %1362 = vdwg.mxu0
    %v1363 = vsub.f32 0.0, %v1358
    %v1364 = vmul.f32 %v1363, 1.442695
    %v1365 = vpow.pop %v1364
    %v1366 = vadd.f32 %v1365, 1.0
    %v1367 = vrcp.pop %v1366
    %1368 = vst [vmem:[#allocation10] sm:$0xff] %v1367
    // Predicated region
    $region54: #{encoder_forward.1} parent=1 // pred_check
      _
    $region55: #{encoder_forward.1} parent=1 // pred_check_branch
      %1370 = sbr.rel (0) target = $region57
    $region56: #{encoder_forward.1} parent=1 // pred_region
      %s1372 = ssub.s32 128, 128
      %1373 = vsyncadd [#allocation4], %s1372
      %s1375 = sshll.u32 [#allocation10], 4
      %s1376 = int_to_ptr.vmem [resolvable:$true] %s1375
      %1378 = dma.vmem_to_hbm [thread:$0]  %s1376, 128, %s9, [#allocation4]
    $region57: #{encoder_forward.1} parent=1 // pred_fallthru
      _
    // Predicated region
    $region58: #{encoder_forward.1} parent=1 // pred_check
      _
    $region59: #{encoder_forward.1} parent=1 // pred_check_branch
      %1380 = sbr.rel (0) target = $region61
    $region60: #{encoder_forward.1} parent=1 // pred_region
      %1381 = dma.done [#allocation4], 128
    $region61: #{encoder_forward.1} parent=1 // pred_fallthru
      _
    %1382 = vsyncpa [#allocation3], 1
    %1383 = vsyncpa [#allocation6], 1
    %1384 = vsyncpa [#allocation9], 1
    %1385 = vsyncpa [#allocation4], 1

</llo_original>
